<compile_context>
chip_gen: v7x
topology: tpu7x:2x2x1
jax: 0.10.0
libtpu: 0.0.40
codegen_flags: <defaults>
</compile_context>

<pallas_src>
import jax
import jax.numpy as jnp
from jax.experimental import pallas as pl
from jax.experimental.pallas import tpu as pltpu


def _upconv_kernel(xp_ref, w_ref, b_ref, o_ref, l_ref):
    # xp_ref: (1, H+2, W+2, C)   padded ORIGINAL-resolution input, one batch
    # w_ref : (9*C, 4*C)         merged tap/parity weight matrix
    # b_ref : (1, 4*C)           bias tiled over the 4 output parities
    # o_ref : (1, TR, W, 4*C)    parity-packed output row tile
    # l_ref : (TR, W, 9*C)       VMEM scratch for channel-concatenated patches
    _, tr, w_out, c4 = o_ref.shape
    c = xp_ref.shape[-1]
    row0 = pl.multiple_of(pl.program_id(1) * tr, tr)

    # im2col over the 3x3 neighborhood of the ORIGINAL image.  Window (a, b)
    # holds padded pixel (row0 + y + a, x + b) at position (y, x).
    for a in range(3):
        for b in range(3):
            k = a * 3 + b
            l_ref[:, :, k * c:(k + 1) * c] = xp_ref[
                0, pl.ds(row0 + a, tr), pl.ds(b, w_out), :]

    # Single merged matmul: all 9 taps (K = 9C) -> all 4 parities (N = 4C).
    lhs = l_ref[...].reshape(tr * w_out, 9 * c)
    acc = jnp.dot(lhs, w_ref[...], preferred_element_type=jnp.float32)
    acc = acc + b_ref[0][None, :]
    o_ref[0] = acc.reshape(tr, w_out, c4).astype(o_ref.dtype)


def _merged_weights(weight_oihw, bias):
    """Torch OIHW 3x3 weights -> merged (9C, 4C) parity matrix + (1, 4C) bias.

    For output parity (py, px), conv tap (dy, dx) reads padded original pixel
    offset a = (py+dy-1)//2 + 1, b = (px+dx-1)//2 + 1 (zero halo of 1).
    """
    c = weight_oihw.shape[0]
    w_big = jnp.zeros((9 * c, 4 * c), weight_oihw.dtype)
    for py in range(2):
        for px in range(2):
            p = py * 2 + px
            for dy in range(3):
                for dx in range(3):
                    a = (py + dy - 1) // 2 + 1
                    b = (px + dx - 1) // 2 + 1
                    k = a * 3 + b
                    w_big = w_big.at[k * c:(k + 1) * c,
                                     p * c:(p + 1) * c].add(
                        weight_oihw[:, :, dy, dx].T)          # (ci, co)
    b_big = jnp.tile(bias, 4).reshape(1, 4 * c)
    return w_big, b_big


def _pick_row_tile(h, w, c, budget_bytes=8 << 20):
    """Largest divisor of H whose per-step working set fits a VMEM budget."""
    best = 1
    in_bytes = (h + 2) * (w + 2) * c * 4          # resident padded input block
    w_bytes = 9 * c * 4 * c * 4
    for tr in range(1, h + 1):
        if h % tr:
            continue
        out_bytes = tr * w * 4 * c * 4
        scratch_bytes = tr * w * 9 * c * 4
        if 2 * in_bytes + 2 * w_bytes + 2 * out_bytes + scratch_bytes <= budget_bytes:
            best = tr
    return best


def upsample_forward(x_nchw, weight_oihw, bias, row_tile=None):
    """x_nchw: (N, C, H, W) float32.  Returns (N, C, 2H, 2W) float32."""
    n, c, h, w = x_nchw.shape
    if row_tile is None:
        row_tile = _pick_row_tile(h, w, c)
    assert h % row_tile == 0, (h, row_tile)

    # glue: NCHW -> NHWC + 1-pixel halo (original resolution only; the x2
    # upsample itself is fused into the kernel, never materialized in HBM).
    x = jnp.transpose(x_nchw, (0, 2, 3, 1))                       # (N, H, W, C)
    xp = jnp.pad(x, ((0, 0), (1, 1), (1, 1), (0, 0)))             # (N, H+2, W+2, C)

    w_big, b_big = _merged_weights(weight_oihw, bias)

    out_packed = pl.pallas_call(
        _upconv_kernel,
        out_shape=jax.ShapeDtypeStruct((n, h, w, 4 * c), jnp.float32),
        grid_spec=pltpu.PrefetchScalarGridSpec(
            num_scalar_prefetch=0,
            grid=(n, h // row_tile),
            in_specs=[
                # full padded image per batch; constant across row tiles -> no
                # re-DMA while iterating the inner (row) grid axis.
                pl.BlockSpec((1, h + 2, w + 2, c), lambda i, t: (i, 0, 0, 0)),
                pl.BlockSpec((9 * c, 4 * c), lambda i, t: (0, 0)),
                pl.BlockSpec((1, 4 * c), lambda i, t: (0, 0)),
            ],
            out_specs=pl.BlockSpec((1, row_tile, w, 4 * c),
                                   lambda i, t: (i, t, 0, 0)),
            scratch_shapes=[pltpu.VMEM((row_tile, w, 9 * c), jnp.float32)],
        ),
        compiler_params=pltpu.CompilerParams(
            dimension_semantics=("parallel", "parallel"),
            vmem_limit_bytes=48 * 1024 * 1024),
    )(xp, w_big, b_big)

    # glue: parity de-interleave is folded into the NHWC->NCHW transpose that
    # the torch interface requires anyway (a single pass over the output).
    out = out_packed.reshape(n, h, w, 2, 2, c)          # (n, y, x, py, px, c)
    out = jnp.transpose(out, (0, 5, 1, 3, 2, 4))        # (n, c, y, py, x, px)
    return out.reshape(n, c, 2 * h, 2 * w)


def _reference(x_nchw, weight_oihw, bias):
    """Pure-JAX reference matching torch semantics (for self-check)."""
    x_up = jnp.repeat(jnp.repeat(x_nchw, 2, axis=2), 2, axis=3)
    out = jax.lax.conv_general_dilated(
        x_up, weight_oihw, window_strides=(1, 1), padding=((1, 1), (1, 1)),
        dimension_numbers=("NCHW", "OIHW", "NCHW"))
    return out + bias[None, :, None, None]


if __name__ == "__main__":
    key = jax.random.PRNGKey(0)
    kx, kw, kb = jax.random.split(key, 3)

    N, C, H, W = 2, 4, 16, 16
    x = jax.random.normal(kx, (N, C, H, W), dtype=jnp.float32)

    # Deterministic Conv2d(C, C, 3, padding=1) parameters (synthetic init).
    fan_in = C * 3 * 3
    bound = 1.0 / (fan_in ** 0.5)
    weight = jax.random.uniform(kw, (C, C, 3, 3), jnp.float32, -bound, bound)
    bias = jax.random.uniform(kb, (C,), jnp.float32, -bound, bound)

    fwd = jax.jit(upsample_forward, static_argnames=("row_tile",))
    ref = _reference(x, weight, bias)

    # Multi-row-tile grid (exercises the dynamic row offset / parallel grid).
    out = jax.block_until_ready(fwd(x, weight, bias, row_tile=8))
    assert out.shape == (N, C, 2 * H, 2 * W), out.shape
    assert jnp.allclose(out, ref, atol=1e-4, rtol=1e-4), "mismatch (row_tile=8)"

    # Single-tile grid (auto-sized path).
    out_full = jax.block_until_ready(fwd(x, weight, bias, row_tile=16))
    assert jnp.allclose(out_full, ref, atol=1e-4, rtol=1e-4), "mismatch (row_tile=16)"

    print("KERNEL_OK")
</pallas_src>

<mosaic_0001>
module attributes {stable_mosaic.version = 11 : i64} {
  func.func @_upconv_kernel(%arg0: i32, %arg1: i32, %arg2: memref<1x18x18x4xf32, #tpu.memory_space<vmem>>, %arg3: memref<36x16xf32, #tpu.memory_space<vmem>>, %arg4: memref<1x16xf32, #tpu.memory_space<vmem>>, %arg5: memref<1x8x16x16xf32, #tpu.memory_space<vmem>>, %arg6: memref<8x16x36xf32, #tpu.memory_space<vmem>>) attributes {dimension_semantics = [#tpu.dimension_semantics<parallel>, #tpu.dimension_semantics<parallel>], iteration_bounds = array<i64: 2, 2>, scalar_prefetch = 0 : i64, scratch_operands = 1 : i64, tpu.core_type = #tpu.core_type<tc>, window_params = [{transform_indices = @transform_0, window_bounds = array<i64: 1, 18, 18, 4>}, {pipeline_mode = #tpu.pipeline_mode<synchronous>, transform_indices = @transform_1, window_bounds = array<i64: 36, 16>}, {pipeline_mode = #tpu.pipeline_mode<synchronous>, transform_indices = @transform_2, window_bounds = array<i64: 1, 16>}, {transform_indices = @transform_3, window_bounds = array<i64: 1, 8, 16, 16>}]} {
    %c8_i32 = arith.constant 8 : i32
    %0 = arith.muli %arg1, %c8_i32 : i32
    %1 = tpu.assume_multiple %0, 8 : i32
    %c0_i32 = arith.constant 0 : i32
    %2 = arith.addi %1, %c0_i32 : i32
    %c0 = arith.constant 0 : index
    %3 = arith.index_cast %2 : i32 to index
    %c0_0 = arith.constant 0 : index
    %c0_1 = arith.constant 0 : index
    %4 = vector.load %arg2[%c0, %3, %c0_0, %c0_1] : memref<1x18x18x4xf32, #tpu.memory_space<vmem>>, vector<1x8x16x4xf32>
    %5 = vector.shape_cast %4 : vector<1x8x16x4xf32> to vector<8x16x4xf32>
    %c0_2 = arith.constant 0 : index
    %c0_3 = arith.constant 0 : index
    %c0_4 = arith.constant 0 : index
    %6 = vector.load %arg6[%c0_2, %c0_3, %c0_4] : memref<8x16x36xf32, #tpu.memory_space<vmem>>, vector<8x16x4xf32>
    tpu.vector_store %arg6[%c0_2, %c0_3, %c0_4], %5 {strides = array<i32>} : memref<8x16x36xf32, #tpu.memory_space<vmem>>, vector<8x16x4xf32>,
    %c0_i32_5 = arith.constant 0 : i32
    %7 = arith.addi %1, %c0_i32_5 : i32
    %c0_6 = arith.constant 0 : index
    %8 = arith.index_cast %7 : i32 to index
    %c1 = arith.constant 1 : index
    %c0_7 = arith.constant 0 : index
    %9 = vector.load %arg2[%c0_6, %8, %c1, %c0_7] : memref<1x18x18x4xf32, #tpu.memory_space<vmem>>, vector<1x8x16x4xf32>
    %10 = vector.shape_cast %9 : vector<1x8x16x4xf32> to vector<8x16x4xf32>
    %c0_8 = arith.constant 0 : index
    %c0_9 = arith.constant 0 : index
    %c4 = arith.constant 4 : index
    %11 = vector.load %arg6[%c0_8, %c0_9, %c4] : memref<8x16x36xf32, #tpu.memory_space<vmem>>, vector<8x16x4xf32>
    tpu.vector_store %arg6[%c0_8, %c0_9, %c4], %10 {strides = array<i32>} : memref<8x16x36xf32, #tpu.memory_space<vmem>>, vector<8x16x4xf32>,
    %c0_i32_10 = arith.constant 0 : i32
    %12 = arith.addi %1, %c0_i32_10 : i32
    %c0_11 = arith.constant 0 : index
    %13 = arith.index_cast %12 : i32 to index
    %c2 = arith.constant 2 : index
    %c0_12 = arith.constant 0 : index
    %14 = vector.load %arg2[%c0_11, %13, %c2, %c0_12] : memref<1x18x18x4xf32, #tpu.memory_space<vmem>>, vector<1x8x16x4xf32>
    %15 = vector.shape_cast %14 : vector<1x8x16x4xf32> to vector<8x16x4xf32>
    %c0_13 = arith.constant 0 : index
    %c0_14 = arith.constant 0 : index
    %c8 = arith.constant 8 : index
    %16 = vector.load %arg6[%c0_13, %c0_14, %c8] : memref<8x16x36xf32, #tpu.memory_space<vmem>>, vector<8x16x4xf32>
    tpu.vector_store %arg6[%c0_13, %c0_14, %c8], %15 {strides = array<i32>} : memref<8x16x36xf32, #tpu.memory_space<vmem>>, vector<8x16x4xf32>,
    %c1_i32 = arith.constant 1 : i32
    %17 = arith.addi %1, %c1_i32 : i32
    %c0_15 = arith.constant 0 : index
    %18 = arith.index_cast %17 : i32 to index
    %c0_16 = arith.constant 0 : index
    %c0_17 = arith.constant 0 : index
    %19 = vector.load %arg2[%c0_15, %18, %c0_16, %c0_17] : memref<1x18x18x4xf32, #tpu.memory_space<vmem>>, vector<1x8x16x4xf32>
    %20 = vector.shape_cast %19 : vector<1x8x16x4xf32> to vector<8x16x4xf32>
    %c0_18 = arith.constant 0 : index
    %c0_19 = arith.constant 0 : index
    %c12 = arith.constant 12 : index
    %21 = vector.load %arg6[%c0_18, %c0_19, %c12] : memref<8x16x36xf32, #tpu.memory_space<vmem>>, vector<8x16x4xf32>
    tpu.vector_store %arg6[%c0_18, %c0_19, %c12], %20 {strides = array<i32>} : memref<8x16x36xf32, #tpu.memory_space<vmem>>, vector<8x16x4xf32>,
    %c1_i32_20 = arith.constant 1 : i32
    %22 = arith.addi %1, %c1_i32_20 : i32
    %c0_21 = arith.constant 0 : index
    %23 = arith.index_cast %22 : i32 to index
    %c1_22 = arith.constant 1 : index
    %c0_23 = arith.constant 0 : index
    %24 = vector.load %arg2[%c0_21, %23, %c1_22, %c0_23] : memref<1x18x18x4xf32, #tpu.memory_space<vmem>>, vector<1x8x16x4xf32>
    %25 = vector.shape_cast %24 : vector<1x8x16x4xf32> to vector<8x16x4xf32>
    %c0_24 = arith.constant 0 : index
    %c0_25 = arith.constant 0 : index
    %c16 = arith.constant 16 : index
    %26 = vector.load %arg6[%c0_24, %c0_25, %c16] : memref<8x16x36xf32, #tpu.memory_space<vmem>>, vector<8x16x4xf32>
    tpu.vector_store %arg6[%c0_24, %c0_25, %c16], %25 {strides = array<i32>} : memref<8x16x36xf32, #tpu.memory_space<vmem>>, vector<8x16x4xf32>,
    %c1_i32_26 = arith.constant 1 : i32
    %27 = arith.addi %1, %c1_i32_26 : i32
    %c0_27 = arith.constant 0 : index
    %28 = arith.index_cast %27 : i32 to index
    %c2_28 = arith.constant 2 : index
    %c0_29 = arith.constant 0 : index
    %29 = vector.load %arg2[%c0_27, %28, %c2_28, %c0_29] : memref<1x18x18x4xf32, #tpu.memory_space<vmem>>, vector<1x8x16x4xf32>
    %30 = vector.shape_cast %29 : vector<1x8x16x4xf32> to vector<8x16x4xf32>
    %c0_30 = arith.constant 0 : index
    %c0_31 = arith.constant 0 : index
    %c20 = arith.constant 20 : index
    %31 = vector.load %arg6[%c0_30, %c0_31, %c20] : memref<8x16x36xf32, #tpu.memory_space<vmem>>, vector<8x16x4xf32>
    tpu.vector_store %arg6[%c0_30, %c0_31, %c20], %30 {strides = array<i32>} : memref<8x16x36xf32, #tpu.memory_space<vmem>>, vector<8x16x4xf32>,
    %c2_i32 = arith.constant 2 : i32
    %32 = arith.addi %1, %c2_i32 : i32
    %c0_32 = arith.constant 0 : index
    %33 = arith.index_cast %32 : i32 to index
    %c0_33 = arith.constant 0 : index
    %c0_34 = arith.constant 0 : index
    %34 = vector.load %arg2[%c0_32, %33, %c0_33, %c0_34] : memref<1x18x18x4xf32, #tpu.memory_space<vmem>>, vector<1x8x16x4xf32>
    %35 = vector.shape_cast %34 : vector<1x8x16x4xf32> to vector<8x16x4xf32>
    %c0_35 = arith.constant 0 : index
    %c0_36 = arith.constant 0 : index
    %c24 = arith.constant 24 : index
    %36 = vector.load %arg6[%c0_35, %c0_36, %c24] : memref<8x16x36xf32, #tpu.memory_space<vmem>>, vector<8x16x4xf32>
    tpu.vector_store %arg6[%c0_35, %c0_36, %c24], %35 {strides = array<i32>} : memref<8x16x36xf32, #tpu.memory_space<vmem>>, vector<8x16x4xf32>,
    %c2_i32_37 = arith.constant 2 : i32
    %37 = arith.addi %1, %c2_i32_37 : i32
    %c0_38 = arith.constant 0 : index
    %38 = arith.index_cast %37 : i32 to index
    %c1_39 = arith.constant 1 : index
    %c0_40 = arith.constant 0 : index
    %39 = vector.load %arg2[%c0_38, %38, %c1_39, %c0_40] : memref<1x18x18x4xf32, #tpu.memory_space<vmem>>, vector<1x8x16x4xf32>
    %40 = vector.shape_cast %39 : vector<1x8x16x4xf32> to vector<8x16x4xf32>
    %c0_41 = arith.constant 0 : index
    %c0_42 = arith.constant 0 : index
    %c28 = arith.constant 28 : index
    %41 = vector.load %arg6[%c0_41, %c0_42, %c28] : memref<8x16x36xf32, #tpu.memory_space<vmem>>, vector<8x16x4xf32>
    tpu.vector_store %arg6[%c0_41, %c0_42, %c28], %40 {strides = array<i32>} : memref<8x16x36xf32, #tpu.memory_space<vmem>>, vector<8x16x4xf32>,
    %c2_i32_43 = arith.constant 2 : i32
    %42 = arith.addi %1, %c2_i32_43 : i32
    %c0_44 = arith.constant 0 : index
    %43 = arith.index_cast %42 : i32 to index
    %c2_45 = arith.constant 2 : index
    %c0_46 = arith.constant 0 : index
    %44 = vector.load %arg2[%c0_44, %43, %c2_45, %c0_46] : memref<1x18x18x4xf32, #tpu.memory_space<vmem>>, vector<1x8x16x4xf32>
    %45 = vector.shape_cast %44 : vector<1x8x16x4xf32> to vector<8x16x4xf32>
    %c0_47 = arith.constant 0 : index
    %c0_48 = arith.constant 0 : index
    %c32 = arith.constant 32 : index
    %46 = vector.load %arg6[%c0_47, %c0_48, %c32] : memref<8x16x36xf32, #tpu.memory_space<vmem>>, vector<8x16x4xf32>
    tpu.vector_store %arg6[%c0_47, %c0_48, %c32], %45 {strides = array<i32>} : memref<8x16x36xf32, #tpu.memory_space<vmem>>, vector<8x16x4xf32>,
    %c0_49 = arith.constant 0 : index
    %c0_50 = arith.constant 0 : index
    %c0_51 = arith.constant 0 : index
    %47 = vector.load %arg6[%c0_49, %c0_50, %c0_51] : memref<8x16x36xf32, #tpu.memory_space<vmem>>, vector<8x16x36xf32>
    %48 = vector.shape_cast %47 : vector<8x16x36xf32> to vector<128x36xf32>
    %c0_52 = arith.constant 0 : index
    %c0_53 = arith.constant 0 : index
    %49 = vector.load %arg3[%c0_52, %c0_53] : memref<36x16xf32, #tpu.memory_space<vmem>>, vector<36x16xf32>
    %cst = arith.constant dense<0.000000e+00> : vector<128x16xf32>
    %50 = tpu.matmul %48, %49, %cst {dimension_numbers = #tpu.dot_dimension_numbers<[1], [0], [0], [1], [0, 0, 1, 1], [], []>} : vector<128x36xf32>, vector<36x16xf32>, vector<128x16xf32> -> vector<128x16xf32>
    %c0_54 = arith.constant 0 : index
    %c0_55 = arith.constant 0 : index
    %51 = vector.load %arg4[%c0_54, %c0_55] : memref<1x16xf32, #tpu.memory_space<vmem>>, vector<1x16xf32>
    %52 = vector.shape_cast %51 : vector<1x16xf32> to vector<16xf32>
    %53 = vector.shape_cast %52 : vector<16xf32> to vector<1x16xf32>
    %54 = vector.broadcast %53 : vector<1x16xf32> to vector<128x16xf32>
    %55 = arith.addf %50, %54 : vector<128x16xf32>
    %56 = vector.shape_cast %55 : vector<128x16xf32> to vector<8x16x16xf32>
    %c0_56 = arith.constant 0 : index
    %c0_57 = arith.constant 0 : index
    %c0_58 = arith.constant 0 : index
    %c0_59 = arith.constant 0 : index
    %57 = vector.load %arg5[%c0_56, %c0_57, %c0_58, %c0_59] : memref<1x8x16x16xf32, #tpu.memory_space<vmem>>, vector<1x8x16x16xf32>
    %58 = vector.shape_cast %57 : vector<1x8x16x16xf32> to vector<8x16x16xf32>
    %59 = vector.shape_cast %56 : vector<8x16x16xf32> to vector<1x8x16x16xf32>
    tpu.vector_store %arg5[%c0_56, %c0_57, %c0_58, %c0_59], %59 {strides = array<i32>} : memref<1x8x16x16xf32, #tpu.memory_space<vmem>>, vector<1x8x16x16xf32>,
    return
  }
  func.func @transform_0(%arg0: i32, %arg1: i32) -> (i32, i32, i32, i32) {
    %c0_i32 = arith.constant 0 : i32
    %c0_i32_0 = arith.constant 0 : i32
    %c0_i32_1 = arith.constant 0 : i32
    %c0_i32_2 = arith.constant 0 : i32
    return %arg0, %c0_i32, %c0_i32_0, %c0_i32_1 : i32, i32, i32, i32
  }
  func.func @transform_1(%arg0: i32, %arg1: i32) -> (i32, i32) {
    %c0_i32 = arith.constant 0 : i32
    %c0_i32_0 = arith.constant 0 : i32
    %c0_i32_1 = arith.constant 0 : i32
    return %c0_i32, %c0_i32_0 : i32, i32
  }
  func.func @transform_2(%arg0: i32, %arg1: i32) -> (i32, i32) {
    %c0_i32 = arith.constant 0 : i32
    %c0_i32_0 = arith.constant 0 : i32
    %c0_i32_1 = arith.constant 0 : i32
    return %c0_i32, %c0_i32_0 : i32, i32
  }
  func.func @transform_3(%arg0: i32, %arg1: i32) -> (i32, i32, i32, i32) {
    %c0_i32 = arith.constant 0 : i32
    %c0_i32_0 = arith.constant 0 : i32
    %c0_i32_1 = arith.constant 0 : i32
    return %arg0, %arg1, %c0_i32, %c0_i32_0 : i32, i32, i32, i32
  }
}

</mosaic_0001>

<llo_original>
// kernel: tile.8
$region0: #{tile.8}
  #allocation0 [shape = 's32[1]{0}', space=sflag, size = 0x4, scoped, tag = 'scoped memory for tile.8']
  %s0 = inlined_call_operand.vmem [shape: f32[4], index: 0, kind: input, shape index: {}]
  %s1 = inlined_call_operand.vmem [shape: f32[4,4], index: 1, kind: output, shape index: {}]
  // Predicated region
  $region2: #{tile.8} parent=0 // pred_check
    _
  $region3: #{tile.8} parent=0 // pred_check_branch
    %3 = sbr.rel (0) target = $region5
  $region4: #{tile.8} parent=0 // pred_region
    _
  $region5: #{tile.8} parent=0 // pred_fallthru
    _
  %v4 = vld [vmem:[%s0] ss:$0 sm:$0xff]
  %5 = vst [vmem:[%s1] sm:$0xf] %v4

// kernel: tile.9
$region0: #{tile.9}
  %s0 = inlined_call_operand.vmem [shape: f32[4,4], index: 0, kind: input, shape index: {}]
  %s1 = inlined_call_operand.vmem [shape: f32[1,16], index: 1, kind: output, shape index: {}]
  $region1: #{tile.9} parent=0
    #allocation0 [shape = 'u8[4096]{0}', space=vmem, size = 0x1000, scoped, tag = 'scoped mem for output reshape']
    #allocation1 [shape = 'u8[4096]{0}', space=vmem, size = 0x1000, scoped, tag = 'scoped mem for input reshape']
    %s3 = sshllo.u32 0, 4
    %v4 = vld [vmem:[%s0] sm:%s3]
    %5 = vst [vmem:[#allocation1] sm:%s3] %v4
    %v6 = vld [vmem:[#allocation1] sm:$0x1]
    %vm7 = vcmask 31744
    %8 = vst.msk [vmem:[#allocation0] sm:$0x1] %vm7, %v6
    %s9 = scalar_lea.vmem [#allocation1], 3
    %v10 = vld [vmem:[%s9] sm:$0x1]
    %11 = vrot.lane.b32.xlu0 %v10, 12
    %v12 = vpop.permute.xlu0 %11
    %vm13 = vcmask 130144
    %14 = vst.msk [vmem:[#allocation0] sm:$0x1] %vm13, %v12
    %s15 = scalar_lea.vmem [#allocation1], 2
    %v16 = vld [vmem:[%s15] sm:$0x1]
    %17 = vrot.lane.b32.xlu0 %v16, 8
    %v18 = vpop.permute.xlu0 %17
    %vm19 = vcmask 97344
    %20 = vst.msk [vmem:[#allocation0] sm:$0x1] %vm19, %v18
    %s21 = scalar_lea.vmem [#allocation1], 1
    %v22 = vld [vmem:[%s21] sm:$0x1]
    %23 = vrot.lane.b32.xlu0 %v22, 4
    %v24 = vpop.permute.xlu0 %23
    %vm25 = vcmask 64544
    %26 = vst.msk [vmem:[#allocation0] sm:$0x1] %vm25, %v24
    %s28 = sshllo.u32 0, 1
    %v30 = vld [vmem:[#allocation0] sm:%s28]
    %s31 = sshllo.u32 0, 1
    %32 = vst [vmem:[%s1] sm:%s31] %v30

// kernel: upsample_forward.1
$region0: #{upsample_forward.1}
  #allocation0 [shape = 'u32[]', space=smem, size = 0x4, offset = 0x4, fixed_abs, tag = 'smem constant byte address 0x4 - core index']
  #allocation1 [shape = 'u32[144,128]{1,0:T(1,128)}', space=vmem, size = 0x12000, scoped, tag = 'internal scratch']
  #allocation2 [shape = 'f32[8,16,36]{2,1,0:T(8,128)}', space=vmem, size = 0x10000, scoped, tag = 'scratch operand']
  %s0 = inlined_call_operand.vmem [shape: f32[2,18,18,4], index: 0, kind: input, shape index: {}]
  %s1 = inlined_call_operand.vmem [shape: f32[36,16], index: 1, kind: input, shape index: {}]
  %s2 = inlined_call_operand.vmem [shape: f32[1,16], index: 2, kind: input, shape index: {}]
  %s3 = inlined_call_operand.vmem [shape: f32[2,16,16,16], index: 3, kind: output, shape index: {}]
  %s4 = sld [smem:[#allocation0]]
  $region45: #{upsample_forward.1} parent=0
    _
  %s6 = ssub.s32 1, %s4
  %s7 = scalar_select 0, %s6, %s4
  loop: start=0, step=1, limit=6
  $region2: #{upsample_forward.1} parent=0 // loop_pre_header
    _
  $region3: #{upsample_forward.1} parent=0 // loop_header
    %s9 = sphi 0, %s13
    %p10 = scmp.ge.s32.totalorder %s9, 6
    %s16 = sphi 0, %s28
    %s17 = sphi 0, %s24
    %s18 = sphi 0, %s16
    %s19 = sphi 0, %s17
    %s20 = sphi 0, %s18
    %s21 = sphi 0, %s19
    %s31 = sphi 0, %s33
    %s34 = sphi 0, %s31
    %s35 = sphi 0, %s34
    %s51 = sphi 0, %s35
    %s55 = sphi 0, %s55
    %s57 = sphi 0, %s55
    %s58 = sphi 0, %s57
    %s72 = sphi 0, %s58
    %s76 = sphi 0, %s76
    %s78 = sphi 0, %s76
    %s79 = sphi 0, %s78
    %s93 = sphi 0, %s79
    %s101 = sphi 0, %s103
    %s104 = sphi 0, %s101
    %s105 = sphi 0, %s104
    %s121 = sphi 0, %s105
  $region4: #{upsample_forward.1} parent=0 // loop_header_branch
    %12 = sbr.rel (%p10) target = $region8
  $region5: #{upsample_forward.1} parent=0 // loop_body
    %s14 = ssub.s32 %s9, 1
    %s15 = ssub.s32 %s9, 2
    %s22 = sadd.s32 1, %s17
    %p23 = scmp.ge.s32.totalorder %s22, 2
    %s24 = scalar_select %p23, 0, %s22
    %s25 = sadd.s32 1, %s16
    %s26 = scalar_select %p23, %s25, %s16
    %p27 = scmp.ge.s32.totalorder %s26, 2
    %s28 = scalar_select %p27, 0, %s26
    %s29 = ssub.s32 %s16, %s28
    %p30 = scmp.eq.s32.totalorder %s29, 0
    %s32 = sadd.s32 %s31, 1
    %s33 = scalar_select %p30, %s31, %s32
    %p36 = pneg %p30
    %p37 = scmp.eq.s32.totalorder %s9, 3
    %p38 = por %p36, %p37
    %p39 = scmp.ne.s32.totalorder %s31, %s34
    %p40 = scmp.eq.s32.totalorder %s9, 0
    %p41 = por %p39, %p40
    %p42 = scmp.ne.s32.totalorder %s31, %s34
    %p43 = scmp.eq.s32.totalorder %s14, 3
    %p44 = por %p42, %p43
    %p45 = scmp.ne.s32.totalorder %s34, %s35
    %p46 = scmp.eq.s32.totalorder %s14, 0
    %p47 = por %p45, %p46
    %p48 = scmp.ne.s32.totalorder %s34, %s35
    %p49 = scmp.eq.s32.totalorder %s15, 3
    %p50 = por %p48, %p49
    %p52 = scmp.ne.s32.totalorder %s35, %s51
    %p53 = scmp.eq.s32.totalorder %s15, 0
    %p54 = por %p52, %p53
    %s56 = sadd.s32 %s55, 1
    %p59 = scmp.eq.s32.totalorder %s9, 3
    %p60 = scmp.ne.s32.totalorder %s55, %s57
    %p61 = scmp.eq.s32.totalorder %s9, 0
    %p62 = por %p60, %p61
    %p63 = scmp.ne.s32.totalorder %s55, %s57
    %p64 = scmp.eq.s32.totalorder %s14, 3
    %p65 = por %p63, %p64
    %p66 = scmp.ne.s32.totalorder %s57, %s58
    %p67 = scmp.eq.s32.totalorder %s14, 0
    %p68 = por %p66, %p67
    %p69 = scmp.ne.s32.totalorder %s57, %s58
    %p70 = scmp.eq.s32.totalorder %s15, 3
    %p71 = por %p69, %p70
    %p73 = scmp.ne.s32.totalorder %s58, %s72
    %p74 = scmp.eq.s32.totalorder %s15, 0
    %p75 = por %p73, %p74
    %s77 = sadd.s32 %s76, 1
    %p80 = scmp.eq.s32.totalorder %s9, 3
    %p81 = scmp.ne.s32.totalorder %s76, %s78
    %p82 = scmp.eq.s32.totalorder %s9, 0
    %p83 = por %p81, %p82
    %p84 = scmp.ne.s32.totalorder %s76, %s78
    %p85 = scmp.eq.s32.totalorder %s14, 3
    %p86 = por %p84, %p85
    %p87 = scmp.ne.s32.totalorder %s78, %s79
    %p88 = scmp.eq.s32.totalorder %s14, 0
    %p89 = por %p87, %p88
    %p90 = scmp.ne.s32.totalorder %s78, %s79
    %p91 = scmp.eq.s32.totalorder %s15, 3
    %p92 = por %p90, %p91
    %p94 = scmp.ne.s32.totalorder %s79, %s93
    %p95 = scmp.eq.s32.totalorder %s15, 0
    %p96 = por %p94, %p95
    %s97 = ssub.s32 %s16, %s28
    %s98 = ssub.s32 %s17, %s24
    %s99 = sor.u32 %s97, %s98
    %p100 = scmp.eq.s32.totalorder %s99, 0
    %s102 = sadd.s32 %s101, 1
    %s103 = scalar_select %p100, %s101, %s102
    %p106 = pneg %p100
    %p107 = scmp.eq.s32.totalorder %s9, 3
    %p108 = por %p106, %p107
    %p109 = scmp.ne.s32.totalorder %s101, %s104
    %p110 = scmp.eq.s32.totalorder %s9, 0
    %p111 = por %p109, %p110
    %p112 = scmp.ne.s32.totalorder %s101, %s104
    %p113 = scmp.eq.s32.totalorder %s14, 3
    %p114 = por %p112, %p113
    %p115 = scmp.ne.s32.totalorder %s104, %s105
    %p116 = scmp.eq.s32.totalorder %s14, 0
    %p117 = por %p115, %p116
    %p118 = scmp.ne.s32.totalorder %s104, %s105
    %p119 = scmp.eq.s32.totalorder %s15, 3
    %p120 = por %p118, %p119
    %p122 = scmp.ne.s32.totalorder %s105, %s121
    %p123 = scmp.eq.s32.totalorder %s15, 0
    %p124 = por %p122, %p123
    %p125 = scmp.le.s32.totalorder 1, %s9
    %p126 = scmp.lt.s32.totalorder %s9, 5
    %p127 = pnand %p125, %p126
    %p128 = pneg %p127
    // Predicated region
    $region9: #{upsample_forward.1} parent=5 // pred_check
      _
    $region10: #{upsample_forward.1} parent=5 // pred_check_branch
      %130 = sbr.rel (%p127) target = $region12
    $region11: #{upsample_forward.1} parent=5 // pred_region
      %s131 = ssub.s32 %s9, 1
      // Predicated region
      $region13: #{upsample_forward.1} parent=11 // pred_check
        %p132 = pneg %p68
      $region14: #{upsample_forward.1} parent=11 // pred_check_branch
        %134 = sbr.rel (%p132) target = $region16
      $region15: #{upsample_forward.1} parent=11 // pred_region
        _
      $region16: #{upsample_forward.1} parent=11 // pred_fallthru
        _
      // Predicated region
      $region17: #{upsample_forward.1} parent=11 // pred_check
        %p135 = pneg %p89
      $region18: #{upsample_forward.1} parent=11 // pred_check_branch
        %137 = sbr.rel (%p135) target = $region20
      $region19: #{upsample_forward.1} parent=11 // pred_region
        _
      $region20: #{upsample_forward.1} parent=11 // pred_fallthru
        _
    $region12: #{upsample_forward.1} parent=5 // pred_fallthru
      _
    %p138 = scmp.lt.s32.totalorder %s9, 4
    // Predicated region
    $region21: #{upsample_forward.1} parent=5 // pred_check
      %p139 = pneg %p138
    $region22: #{upsample_forward.1} parent=5 // pred_check_branch
      %141 = sbr.rel (%p139) target = $region24
    $region23: #{upsample_forward.1} parent=5 // pred_region
      // Predicated region
      $region25: #{upsample_forward.1} parent=23 // pred_check
        %p142 = pneg %p41
      $region26: #{upsample_forward.1} parent=23 // pred_check_branch
        %144 = sbr.rel (%p142) target = $region28
      $region27: #{upsample_forward.1} parent=23 // pred_region
        %p145 = scmp.lt.s32.totalorder %s16, 1
        %s146 = scalar_select %p145, %s16, 1
        %s147 = smul.addr %s146, 54
        %s148 = smul.addr %s147, 8
        %s149 = scalar_lea.vmem %s0, %s148
      $region28: #{upsample_forward.1} parent=23 // pred_fallthru
        _
    $region24: #{upsample_forward.1} parent=5 // pred_fallthru
      _
    %p150 = scmp.le.s32.totalorder 1, %s9
    %p151 = scmp.lt.s32.totalorder %s9, 5
    %p152 = pnand %p150, %p151
    %p153 = pneg %p152
    // Predicated region
    $region29: #{upsample_forward.1} parent=5 // pred_check
      _
    $region30: #{upsample_forward.1} parent=5 // pred_check_branch
      %155 = sbr.rel (%p152) target = $region32
    $region31: #{upsample_forward.1} parent=5 // pred_region
      %s156 = ssub.s32 %s9, 1
      %p157 = scmp.lt.s32.totalorder %s18, 1
      %s158 = scalar_select %p157, %s18, 1
      %s159 = smul.addr %s158, 54
      %s160 = smul.addr %s159, 8
      %s161 = scalar_lea.vmem %s0, %s160
      %p162 = pneg %p47
      %p163 = pneg %p44
      %p164 = pneg %p68
      %p165 = pneg %p65
      %p166 = pneg %p89
      %p167 = pneg %p86
      %p168 = pneg %p117
      %p169 = pneg %p114
      %s170 = smul.u32 8, %s19
      %p171 = scmp.lt.s32.totalorder %s18, 1
      %s172 = scalar_select %p171, %s18, 1
      %p173 = scmp.lt.s32.totalorder %s170, 15
      %s174 = scalar_select %p173, %s170, 15
      %s175 = smul.addr %s174, 2
      %s176 = smul.addr %s172, 32
      %s177 = sadd.s32 %s175, %s176
      %s178 = smul.addr %s177, 8
      %s179 = scalar_lea.vmem %s3, %s178
      %p180 = scmp.lt.s32.totalorder %s18, 1
      %s181 = scalar_select %p180, %s18, 1
      %s182 = smul.addr %s181, 54
      %s183 = smul.addr %s182, 8
      %s184 = scalar_lea.vmem %s0, %s183
      %s185 = smul.u32 8, %s19
      %p186 = scmp.lt.s32.totalorder %s18, 1
      %s187 = scalar_select %p186, %s18, 1
      %p188 = scmp.lt.s32.totalorder %s185, 15
      %s189 = scalar_select %p188, %s185, 15
      %s190 = smul.addr %s189, 2
      %s191 = smul.addr %s187, 32
      %s192 = sadd.s32 %s190, %s191
      %s193 = smul.addr %s192, 8
      %s194 = scalar_lea.vmem %s3, %s193
      %s195 = smul.u32 8, %s19
      %s196 = smul.u32 %s19, 8
      %s197 = smul.u32 %s196, 24
      %s198 = scalar_lea.vmem %s184, %s197
      %v199 = vld [vmem:[%s198] sm:$0xff]
      %v200 = vld [vmem:[%s198 + $0x8] sm:$0xff]
      %v201 = vld [vmem:[%s198 + $0x18] sm:$0xff]
      %v202 = vld [vmem:[%s198 + $0x20] sm:$0xff]
      %v203 = vld [vmem:[%s198 + $0x30] sm:$0xff]
      %v204 = vld [vmem:[%s198 + $0x38] sm:$0xff]
      %v205 = vld [vmem:[%s198 + $0x48] sm:$0xff]
      %v206 = vld [vmem:[%s198 + $0x50] sm:$0xff]
      %v207 = vld [vmem:[%s198 + $0x60] sm:$0xff]
      %v208 = vld [vmem:[%s198 + $0x68] sm:$0xff]
      %v209 = vld [vmem:[%s198 + $0x78] sm:$0xff]
      %v210 = vld [vmem:[%s198 + $0x80] sm:$0xff]
      %v211 = vld [vmem:[%s198 + $0x90] sm:$0xff]
      %v212 = vld [vmem:[%s198 + $0x98] sm:$0xff]
      %v213 = vld [vmem:[%s198 + $0xa8] sm:$0xff]
      %v214 = vld [vmem:[%s198 + $0xb0] sm:$0xff]
      %vm215 = vcmask 31744
      %216 = vst.msk [vmem:[#allocation2] sm:$0xff] %vm215, %v199
      %217 = vst.msk [vmem:[#allocation2 + $0x8] sm:$0xff] %vm215, %v200
      %218 = vst.msk [vmem:[#allocation2 + $0x10] sm:$0xff] %vm215, %v201
      %219 = vst.msk [vmem:[#allocation2 + $0x18] sm:$0xff] %vm215, %v202
      %220 = vst.msk [vmem:[#allocation2 + $0x20] sm:$0xff] %vm215, %v203
      %221 = vst.msk [vmem:[#allocation2 + $0x28] sm:$0xff] %vm215, %v204
      %222 = vst.msk [vmem:[#allocation2 + $0x30] sm:$0xff] %vm215, %v205
      %223 = vst.msk [vmem:[#allocation2 + $0x38] sm:$0xff] %vm215, %v206
      %224 = vst.msk [vmem:[#allocation2 + $0x40] sm:$0xff] %vm215, %v207
      %225 = vst.msk [vmem:[#allocation2 + $0x48] sm:$0xff] %vm215, %v208
      %226 = vst.msk [vmem:[#allocation2 + $0x50] sm:$0xff] %vm215, %v209
      %227 = vst.msk [vmem:[#allocation2 + $0x58] sm:$0xff] %vm215, %v210
      %228 = vst.msk [vmem:[#allocation2 + $0x60] sm:$0xff] %vm215, %v211
      %229 = vst.msk [vmem:[#allocation2 + $0x68] sm:$0xff] %vm215, %v212
      %230 = vst.msk [vmem:[#allocation2 + $0x70] sm:$0xff] %vm215, %v213
      %231 = vst.msk [vmem:[#allocation2 + $0x78] sm:$0xff] %vm215, %v214
      %v232 = vld [vmem:[%s198 + $0x1] sm:$0xff]
      %v233 = vld [vmem:[%s198 + $0x9] sm:$0xff]
      %v234 = vld [vmem:[%s198 + $0x19] sm:$0xff]
      %v235 = vld [vmem:[%s198 + $0x21] sm:$0xff]
      %v236 = vld [vmem:[%s198 + $0x31] sm:$0xff]
      %v237 = vld [vmem:[%s198 + $0x39] sm:$0xff]
      %v238 = vld [vmem:[%s198 + $0x49] sm:$0xff]
      %v239 = vld [vmem:[%s198 + $0x51] sm:$0xff]
      %v240 = vld [vmem:[%s198 + $0x61] sm:$0xff]
      %v241 = vld [vmem:[%s198 + $0x69] sm:$0xff]
      %v242 = vld [vmem:[%s198 + $0x79] sm:$0xff]
      %v243 = vld [vmem:[%s198 + $0x81] sm:$0xff]
      %v244 = vld [vmem:[%s198 + $0x91] sm:$0xff]
      %v245 = vld [vmem:[%s198 + $0x99] sm:$0xff]
      %v246 = vld [vmem:[%s198 + $0xa9] sm:$0xff]
      %v247 = vld [vmem:[%s198 + $0xb1] sm:$0xff]
      %264 = vrot.lane.b32.xlu0 %v232, 4
      %v265 = vpop.permute.xlu0 %264
      %266 = vrot.lane.b32.xlu0 %v233, 4
      %v267 = vpop.permute.xlu0 %266
      %268 = vrot.lane.b32.xlu0 %v234, 4
      %v269 = vpop.permute.xlu0 %268
      %270 = vrot.lane.b32.xlu0 %v235, 4
      %v271 = vpop.permute.xlu0 %270
      %272 = vrot.lane.b32.xlu0 %v236, 4
      %v273 = vpop.permute.xlu0 %272
      %274 = vrot.lane.b32.xlu0 %v237, 4
      %v275 = vpop.permute.xlu0 %274
      %276 = vrot.lane.b32.xlu0 %v238, 4
      %v277 = vpop.permute.xlu0 %276
      %278 = vrot.lane.b32.xlu0 %v239, 4
      %v279 = vpop.permute.xlu0 %278
      %280 = vrot.lane.b32.xlu0 %v240, 4
      %v281 = vpop.permute.xlu0 %280
      %282 = vrot.lane.b32.xlu0 %v241, 4
      %v283 = vpop.permute.xlu0 %282
      %284 = vrot.lane.b32.xlu0 %v242, 4
      %v285 = vpop.permute.xlu0 %284
      %286 = vrot.lane.b32.xlu0 %v243, 4
      %v287 = vpop.permute.xlu0 %286
      %288 = vrot.lane.b32.xlu0 %v244, 4
      %v289 = vpop.permute.xlu0 %288
      %290 = vrot.lane.b32.xlu0 %v245, 4
      %v291 = vpop.permute.xlu0 %290
      %292 = vrot.lane.b32.xlu0 %v246, 4
      %v293 = vpop.permute.xlu0 %292
      %294 = vrot.lane.b32.xlu0 %v247, 4
      %v295 = vpop.permute.xlu0 %294
      %vm312 = vcmask 64544
      %313 = vst.msk [vmem:[#allocation2] sm:$0xff] %vm312, %v265
      %314 = vst.msk [vmem:[#allocation2 + $0x8] sm:$0xff] %vm312, %v267
      %315 = vst.msk [vmem:[#allocation2 + $0x10] sm:$0xff] %vm312, %v269
      %316 = vst.msk [vmem:[#allocation2 + $0x18] sm:$0xff] %vm312, %v271
      %317 = vst.msk [vmem:[#allocation2 + $0x20] sm:$0xff] %vm312, %v273
      %318 = vst.msk [vmem:[#allocation2 + $0x28] sm:$0xff] %vm312, %v275
      %319 = vst.msk [vmem:[#allocation2 + $0x30] sm:$0xff] %vm312, %v277
      %320 = vst.msk [vmem:[#allocation2 + $0x38] sm:$0xff] %vm312, %v279
      %321 = vst.msk [vmem:[#allocation2 + $0x40] sm:$0xff] %vm312, %v281
      %322 = vst.msk [vmem:[#allocation2 + $0x48] sm:$0xff] %vm312, %v283
      %323 = vst.msk [vmem:[#allocation2 + $0x50] sm:$0xff] %vm312, %v285
      %324 = vst.msk [vmem:[#allocation2 + $0x58] sm:$0xff] %vm312, %v287
      %325 = vst.msk [vmem:[#allocation2 + $0x60] sm:$0xff] %vm312, %v289
      %326 = vst.msk [vmem:[#allocation2 + $0x68] sm:$0xff] %vm312, %v291
      %327 = vst.msk [vmem:[#allocation2 + $0x70] sm:$0xff] %vm312, %v293
      %328 = vst.msk [vmem:[#allocation2 + $0x78] sm:$0xff] %vm312, %v295
      %v329 = vld [vmem:[%s198 + $0x2] sm:$0xff]
      %v330 = vld [vmem:[%s198 + $0xa] sm:$0xff]
      %v331 = vld [vmem:[%s198 + $0x1a] sm:$0xff]
      %v332 = vld [vmem:[%s198 + $0x22] sm:$0xff]
      %v333 = vld [vmem:[%s198 + $0x32] sm:$0xff]
      %v334 = vld [vmem:[%s198 + $0x3a] sm:$0xff]
      %v335 = vld [vmem:[%s198 + $0x4a] sm:$0xff]
      %v336 = vld [vmem:[%s198 + $0x52] sm:$0xff]
      %v337 = vld [vmem:[%s198 + $0x62] sm:$0xff]
      %v338 = vld [vmem:[%s198 + $0x6a] sm:$0xff]
      %v339 = vld [vmem:[%s198 + $0x7a] sm:$0xff]
      %v340 = vld [vmem:[%s198 + $0x82] sm:$0xff]
      %v341 = vld [vmem:[%s198 + $0x92] sm:$0xff]
      %v342 = vld [vmem:[%s198 + $0x9a] sm:$0xff]
      %v343 = vld [vmem:[%s198 + $0xaa] sm:$0xff]
      %v344 = vld [vmem:[%s198 + $0xb2] sm:$0xff]
      %361 = vrot.lane.b32.xlu0 %v329, 8
      %v362 = vpop.permute.xlu0 %361
      %363 = vrot.lane.b32.xlu0 %v330, 8
      %v364 = vpop.permute.xlu0 %363
      %365 = vrot.lane.b32.xlu0 %v331, 8
      %v366 = vpop.permute.xlu0 %365
      %367 = vrot.lane.b32.xlu0 %v332, 8
      %v368 = vpop.permute.xlu0 %367
      %369 = vrot.lane.b32.xlu0 %v333, 8
      %v370 = vpop.permute.xlu0 %369
      %371 = vrot.lane.b32.xlu0 %v334, 8
      %v372 = vpop.permute.xlu0 %371
      %373 = vrot.lane.b32.xlu0 %v335, 8
      %v374 = vpop.permute.xlu0 %373
      %375 = vrot.lane.b32.xlu0 %v336, 8
      %v376 = vpop.permute.xlu0 %375
      %377 = vrot.lane.b32.xlu0 %v337, 8
      %v378 = vpop.permute.xlu0 %377
      %379 = vrot.lane.b32.xlu0 %v338, 8
      %v380 = vpop.permute.xlu0 %379
      %381 = vrot.lane.b32.xlu0 %v339, 8
      %v382 = vpop.permute.xlu0 %381
      %383 = vrot.lane.b32.xlu0 %v340, 8
      %v384 = vpop.permute.xlu0 %383
      %385 = vrot.lane.b32.xlu0 %v341, 8
      %v386 = vpop.permute.xlu0 %385
      %387 = vrot.lane.b32.xlu0 %v342, 8
      %v388 = vpop.permute.xlu0 %387
      %389 = vrot.lane.b32.xlu0 %v343, 8
      %v390 = vpop.permute.xlu0 %389
      %391 = vrot.lane.b32.xlu0 %v344, 8
      %v392 = vpop.permute.xlu0 %391
      %vm409 = vcmask 97344
      %410 = vst.msk [vmem:[#allocation2] sm:$0xff] %vm409, %v362
      %411 = vst.msk [vmem:[#allocation2 + $0x8] sm:$0xff] %vm409, %v364
      %412 = vst.msk [vmem:[#allocation2 + $0x10] sm:$0xff] %vm409, %v366
      %413 = vst.msk [vmem:[#allocation2 + $0x18] sm:$0xff] %vm409, %v368
      %414 = vst.msk [vmem:[#allocation2 + $0x20] sm:$0xff] %vm409, %v370
      %415 = vst.msk [vmem:[#allocation2 + $0x28] sm:$0xff] %vm409, %v372
      %416 = vst.msk [vmem:[#allocation2 + $0x30] sm:$0xff] %vm409, %v374
      %417 = vst.msk [vmem:[#allocation2 + $0x38] sm:$0xff] %vm409, %v376
      %418 = vst.msk [vmem:[#allocation2 + $0x40] sm:$0xff] %vm409, %v378
      %419 = vst.msk [vmem:[#allocation2 + $0x48] sm:$0xff] %vm409, %v380
      %420 = vst.msk [vmem:[#allocation2 + $0x50] sm:$0xff] %vm409, %v382
      %421 = vst.msk [vmem:[#allocation2 + $0x58] sm:$0xff] %vm409, %v384
      %422 = vst.msk [vmem:[#allocation2 + $0x60] sm:$0xff] %vm409, %v386
      %423 = vst.msk [vmem:[#allocation2 + $0x68] sm:$0xff] %vm409, %v388
      %424 = vst.msk [vmem:[#allocation2 + $0x70] sm:$0xff] %vm409, %v390
      %425 = vst.msk [vmem:[#allocation2 + $0x78] sm:$0xff] %vm409, %v392
      %s426 = sadd.s32 %s196, 1
      %s427 = smul.u32 %s426, 24
      %s428 = scalar_lea.vmem %s184, %s427
      %v429 = vld [vmem:[%s428] sm:$0xff]
      %v430 = vld [vmem:[%s428 + $0x8] sm:$0xff]
      %v431 = vld [vmem:[%s428 + $0x18] sm:$0xff]
      %v432 = vld [vmem:[%s428 + $0x20] sm:$0xff]
      %v433 = vld [vmem:[%s428 + $0x30] sm:$0xff]
      %v434 = vld [vmem:[%s428 + $0x38] sm:$0xff]
      %v435 = vld [vmem:[%s428 + $0x48] sm:$0xff]
      %v436 = vld [vmem:[%s428 + $0x50] sm:$0xff]
      %v437 = vld [vmem:[%s428 + $0x60] sm:$0xff]
      %v438 = vld [vmem:[%s428 + $0x68] sm:$0xff]
      %v439 = vld [vmem:[%s428 + $0x78] sm:$0xff]
      %v440 = vld [vmem:[%s428 + $0x80] sm:$0xff]
      %v441 = vld [vmem:[%s428 + $0x90] sm:$0xff]
      %v442 = vld [vmem:[%s428 + $0x98] sm:$0xff]
      %v443 = vld [vmem:[%s428 + $0xa8] sm:$0xff]
      %v444 = vld [vmem:[%s428 + $0xb0] sm:$0xff]
      %461 = vrot.lane.b32.xlu0 %v429, 12
      %v462 = vpop.permute.xlu0 %461
      %463 = vrot.lane.b32.xlu0 %v430, 12
      %v464 = vpop.permute.xlu0 %463
      %465 = vrot.lane.b32.xlu0 %v431, 12
      %v466 = vpop.permute.xlu0 %465
      %467 = vrot.lane.b32.xlu0 %v432, 12
      %v468 = vpop.permute.xlu0 %467
      %469 = vrot.lane.b32.xlu0 %v433, 12
      %v470 = vpop.permute.xlu0 %469
      %471 = vrot.lane.b32.xlu0 %v434, 12
      %v472 = vpop.permute.xlu0 %471
      %473 = vrot.lane.b32.xlu0 %v435, 12
      %v474 = vpop.permute.xlu0 %473
      %475 = vrot.lane.b32.xlu0 %v436, 12
      %v476 = vpop.permute.xlu0 %475
      %477 = vrot.lane.b32.xlu0 %v437, 12
      %v478 = vpop.permute.xlu0 %477
      %479 = vrot.lane.b32.xlu0 %v438, 12
      %v480 = vpop.permute.xlu0 %479
      %481 = vrot.lane.b32.xlu0 %v439, 12
      %v482 = vpop.permute.xlu0 %481
      %483 = vrot.lane.b32.xlu0 %v440, 12
      %v484 = vpop.permute.xlu0 %483
      %485 = vrot.lane.b32.xlu0 %v441, 12
      %v486 = vpop.permute.xlu0 %485
      %487 = vrot.lane.b32.xlu0 %v442, 12
      %v488 = vpop.permute.xlu0 %487
      %489 = vrot.lane.b32.xlu0 %v443, 12
      %v490 = vpop.permute.xlu0 %489
      %491 = vrot.lane.b32.xlu0 %v444, 12
      %v492 = vpop.permute.xlu0 %491
      %vm509 = vcmask 130144
      %510 = vst.msk [vmem:[#allocation2] sm:$0xff] %vm509, %v462
      %511 = vst.msk [vmem:[#allocation2 + $0x8] sm:$0xff] %vm509, %v464
      %512 = vst.msk [vmem:[#allocation2 + $0x10] sm:$0xff] %vm509, %v466
      %513 = vst.msk [vmem:[#allocation2 + $0x18] sm:$0xff] %vm509, %v468
      %514 = vst.msk [vmem:[#allocation2 + $0x20] sm:$0xff] %vm509, %v470
      %515 = vst.msk [vmem:[#allocation2 + $0x28] sm:$0xff] %vm509, %v472
      %516 = vst.msk [vmem:[#allocation2 + $0x30] sm:$0xff] %vm509, %v474
      %517 = vst.msk [vmem:[#allocation2 + $0x38] sm:$0xff] %vm509, %v476
      %518 = vst.msk [vmem:[#allocation2 + $0x40] sm:$0xff] %vm509, %v478
      %519 = vst.msk [vmem:[#allocation2 + $0x48] sm:$0xff] %vm509, %v480
      %520 = vst.msk [vmem:[#allocation2 + $0x50] sm:$0xff] %vm509, %v482
      %521 = vst.msk [vmem:[#allocation2 + $0x58] sm:$0xff] %vm509, %v484
      %522 = vst.msk [vmem:[#allocation2 + $0x60] sm:$0xff] %vm509, %v486
      %523 = vst.msk [vmem:[#allocation2 + $0x68] sm:$0xff] %vm509, %v488
      %524 = vst.msk [vmem:[#allocation2 + $0x70] sm:$0xff] %vm509, %v490
      %525 = vst.msk [vmem:[#allocation2 + $0x78] sm:$0xff] %vm509, %v492
      %v526 = vld [vmem:[%s428 + $0x1] sm:$0xff]
      %v527 = vld [vmem:[%s428 + $0x9] sm:$0xff]
      %v528 = vld [vmem:[%s428 + $0x19] sm:$0xff]
      %v529 = vld [vmem:[%s428 + $0x21] sm:$0xff]
      %v530 = vld [vmem:[%s428 + $0x31] sm:$0xff]
      %v531 = vld [vmem:[%s428 + $0x39] sm:$0xff]
      %v532 = vld [vmem:[%s428 + $0x49] sm:$0xff]
      %v533 = vld [vmem:[%s428 + $0x51] sm:$0xff]
      %v534 = vld [vmem:[%s428 + $0x61] sm:$0xff]
      %v535 = vld [vmem:[%s428 + $0x69] sm:$0xff]
      %v536 = vld [vmem:[%s428 + $0x79] sm:$0xff]
      %v537 = vld [vmem:[%s428 + $0x81] sm:$0xff]
      %v538 = vld [vmem:[%s428 + $0x91] sm:$0xff]
      %v539 = vld [vmem:[%s428 + $0x99] sm:$0xff]
      %v540 = vld [vmem:[%s428 + $0xa9] sm:$0xff]
      %v541 = vld [vmem:[%s428 + $0xb1] sm:$0xff]
      %558 = vrot.lane.b32.xlu0 %v526, 16
      %v559 = vpop.permute.xlu0 %558
      %560 = vrot.lane.b32.xlu0 %v527, 16
      %v561 = vpop.permute.xlu0 %560
      %562 = vrot.lane.b32.xlu0 %v528, 16
      %v563 = vpop.permute.xlu0 %562
      %564 = vrot.lane.b32.xlu0 %v529, 16
      %v565 = vpop.permute.xlu0 %564
      %566 = vrot.lane.b32.xlu0 %v530, 16
      %v567 = vpop.permute.xlu0 %566
      %568 = vrot.lane.b32.xlu0 %v531, 16
      %v569 = vpop.permute.xlu0 %568
      %570 = vrot.lane.b32.xlu0 %v532, 16
      %v571 = vpop.permute.xlu0 %570
      %572 = vrot.lane.b32.xlu0 %v533, 16
      %v573 = vpop.permute.xlu0 %572
      %574 = vrot.lane.b32.xlu0 %v534, 16
      %v575 = vpop.permute.xlu0 %574
      %576 = vrot.lane.b32.xlu0 %v535, 16
      %v577 = vpop.permute.xlu0 %576
      %578 = vrot.lane.b32.xlu0 %v536, 16
      %v579 = vpop.permute.xlu0 %578
      %580 = vrot.lane.b32.xlu0 %v537, 16
      %v581 = vpop.permute.xlu0 %580
      %582 = vrot.lane.b32.xlu0 %v538, 16
      %v583 = vpop.permute.xlu0 %582
      %584 = vrot.lane.b32.xlu0 %v539, 16
      %v585 = vpop.permute.xlu0 %584
      %586 = vrot.lane.b32.xlu0 %v540, 16
      %v587 = vpop.permute.xlu0 %586
      %588 = vrot.lane.b32.xlu0 %v541, 16
      %v589 = vpop.permute.xlu0 %588
      %vm606 = vcmask 162944
      %607 = vst.msk [vmem:[#allocation2] sm:$0xff] %vm606, %v559
      %608 = vst.msk [vmem:[#allocation2 + $0x8] sm:$0xff] %vm606, %v561
      %609 = vst.msk [vmem:[#allocation2 + $0x10] sm:$0xff] %vm606, %v563
      %610 = vst.msk [vmem:[#allocation2 + $0x18] sm:$0xff] %vm606, %v565
      %611 = vst.msk [vmem:[#allocation2 + $0x20] sm:$0xff] %vm606, %v567
      %612 = vst.msk [vmem:[#allocation2 + $0x28] sm:$0xff] %vm606, %v569
      %613 = vst.msk [vmem:[#allocation2 + $0x30] sm:$0xff] %vm606, %v571
      %614 = vst.msk [vmem:[#allocation2 + $0x38] sm:$0xff] %vm606, %v573
      %615 = vst.msk [vmem:[#allocation2 + $0x40] sm:$0xff] %vm606, %v575
      %616 = vst.msk [vmem:[#allocation2 + $0x48] sm:$0xff] %vm606, %v577
      %617 = vst.msk [vmem:[#allocation2 + $0x50] sm:$0xff] %vm606, %v579
      %618 = vst.msk [vmem:[#allocation2 + $0x58] sm:$0xff] %vm606, %v581
      %619 = vst.msk [vmem:[#allocation2 + $0x60] sm:$0xff] %vm606, %v583
      %620 = vst.msk [vmem:[#allocation2 + $0x68] sm:$0xff] %vm606, %v585
      %621 = vst.msk [vmem:[#allocation2 + $0x70] sm:$0xff] %vm606, %v587
      %622 = vst.msk [vmem:[#allocation2 + $0x78] sm:$0xff] %vm606, %v589
      %v623 = vld [vmem:[%s428 + $0x2] sm:$0xff]
      %v624 = vld [vmem:[%s428 + $0xa] sm:$0xff]
      %v625 = vld [vmem:[%s428 + $0x1a] sm:$0xff]
      %v626 = vld [vmem:[%s428 + $0x22] sm:$0xff]
      %v627 = vld [vmem:[%s428 + $0x32] sm:$0xff]
      %v628 = vld [vmem:[%s428 + $0x3a] sm:$0xff]
      %v629 = vld [vmem:[%s428 + $0x4a] sm:$0xff]
      %v630 = vld [vmem:[%s428 + $0x52] sm:$0xff]
      %v631 = vld [vmem:[%s428 + $0x62] sm:$0xff]
      %v632 = vld [vmem:[%s428 + $0x6a] sm:$0xff]
      %v633 = vld [vmem:[%s428 + $0x7a] sm:$0xff]
      %v634 = vld [vmem:[%s428 + $0x82] sm:$0xff]
      %v635 = vld [vmem:[%s428 + $0x92] sm:$0xff]
      %v636 = vld [vmem:[%s428 + $0x9a] sm:$0xff]
      %v637 = vld [vmem:[%s428 + $0xaa] sm:$0xff]
      %v638 = vld [vmem:[%s428 + $0xb2] sm:$0xff]
      %655 = vrot.lane.b32.xlu0 %v623, 20
      %v656 = vpop.permute.xlu0 %655
      %657 = vrot.lane.b32.xlu0 %v624, 20
      %v658 = vpop.permute.xlu0 %657
      %659 = vrot.lane.b32.xlu0 %v625, 20
      %v660 = vpop.permute.xlu0 %659
      %661 = vrot.lane.b32.xlu0 %v626, 20
      %v662 = vpop.permute.xlu0 %661
      %663 = vrot.lane.b32.xlu0 %v627, 20
      %v664 = vpop.permute.xlu0 %663
      %665 = vrot.lane.b32.xlu0 %v628, 20
      %v666 = vpop.permute.xlu0 %665
      %667 = vrot.lane.b32.xlu0 %v629, 20
      %v668 = vpop.permute.xlu0 %667
      %669 = vrot.lane.b32.xlu0 %v630, 20
      %v670 = vpop.permute.xlu0 %669
      %671 = vrot.lane.b32.xlu0 %v631, 20
      %v672 = vpop.permute.xlu0 %671
      %673 = vrot.lane.b32.xlu0 %v632, 20
      %v674 = vpop.permute.xlu0 %673
      %675 = vrot.lane.b32.xlu0 %v633, 20
      %v676 = vpop.permute.xlu0 %675
      %677 = vrot.lane.b32.xlu0 %v634, 20
      %v678 = vpop.permute.xlu0 %677
      %679 = vrot.lane.b32.xlu0 %v635, 20
      %v680 = vpop.permute.xlu0 %679
      %681 = vrot.lane.b32.xlu0 %v636, 20
      %v682 = vpop.permute.xlu0 %681
      %683 = vrot.lane.b32.xlu0 %v637, 20
      %v684 = vpop.permute.xlu0 %683
      %685 = vrot.lane.b32.xlu0 %v638, 20
      %v686 = vpop.permute.xlu0 %685
      %vm703 = vcmask 195744
      %704 = vst.msk [vmem:[#allocation2] sm:$0xff] %vm703, %v656
      %705 = vst.msk [vmem:[#allocation2 + $0x8] sm:$0xff] %vm703, %v658
      %706 = vst.msk [vmem:[#allocation2 + $0x10] sm:$0xff] %vm703, %v660
      %707 = vst.msk [vmem:[#allocation2 + $0x18] sm:$0xff] %vm703, %v662
      %708 = vst.msk [vmem:[#allocation2 + $0x20] sm:$0xff] %vm703, %v664
      %709 = vst.msk [vmem:[#allocation2 + $0x28] sm:$0xff] %vm703, %v666
      %710 = vst.msk [vmem:[#allocation2 + $0x30] sm:$0xff] %vm703, %v668
      %711 = vst.msk [vmem:[#allocation2 + $0x38] sm:$0xff] %vm703, %v670
      %712 = vst.msk [vmem:[#allocation2 + $0x40] sm:$0xff] %vm703, %v672
      %713 = vst.msk [vmem:[#allocation2 + $0x48] sm:$0xff] %vm703, %v674
      %714 = vst.msk [vmem:[#allocation2 + $0x50] sm:$0xff] %vm703, %v676
      %715 = vst.msk [vmem:[#allocation2 + $0x58] sm:$0xff] %vm703, %v678
      %716 = vst.msk [vmem:[#allocation2 + $0x60] sm:$0xff] %vm703, %v680
      %717 = vst.msk [vmem:[#allocation2 + $0x68] sm:$0xff] %vm703, %v682
      %718 = vst.msk [vmem:[#allocation2 + $0x70] sm:$0xff] %vm703, %v684
      %719 = vst.msk [vmem:[#allocation2 + $0x78] sm:$0xff] %vm703, %v686
      %s720 = sadd.s32 %s196, 2
      %s721 = smul.u32 %s720, 24
      %s722 = scalar_lea.vmem %s184, %s721
      %v723 = vld [vmem:[%s722] sm:$0xff]
      %v724 = vld [vmem:[%s722 + $0x8] sm:$0xff]
      %v725 = vld [vmem:[%s722 + $0x18] sm:$0xff]
      %v726 = vld [vmem:[%s722 + $0x20] sm:$0xff]
      %v727 = vld [vmem:[%s722 + $0x30] sm:$0xff]
      %v728 = vld [vmem:[%s722 + $0x38] sm:$0xff]
      %v729 = vld [vmem:[%s722 + $0x48] sm:$0xff]
      %v730 = vld [vmem:[%s722 + $0x50] sm:$0xff]
      %v731 = vld [vmem:[%s722 + $0x60] sm:$0xff]
      %v732 = vld [vmem:[%s722 + $0x68] sm:$0xff]
      %v733 = vld [vmem:[%s722 + $0x78] sm:$0xff]
      %v734 = vld [vmem:[%s722 + $0x80] sm:$0xff]
      %v735 = vld [vmem:[%s722 + $0x90] sm:$0xff]
      %v736 = vld [vmem:[%s722 + $0x98] sm:$0xff]
      %v737 = vld [vmem:[%s722 + $0xa8] sm:$0xff]
      %v738 = vld [vmem:[%s722 + $0xb0] sm:$0xff]
      %755 = vrot.lane.b32.xlu0 %v723, 24
      %v756 = vpop.permute.xlu0 %755
      %757 = vrot.lane.b32.xlu0 %v724, 24
      %v758 = vpop.permute.xlu0 %757
      %759 = vrot.lane.b32.xlu0 %v725, 24
      %v760 = vpop.permute.xlu0 %759
      %761 = vrot.lane.b32.xlu0 %v726, 24
      %v762 = vpop.permute.xlu0 %761
      %763 = vrot.lane.b32.xlu0 %v727, 24
      %v764 = vpop.permute.xlu0 %763
      %765 = vrot.lane.b32.xlu0 %v728, 24
      %v766 = vpop.permute.xlu0 %765
      %767 = vrot.lane.b32.xlu0 %v729, 24
      %v768 = vpop.permute.xlu0 %767
      %769 = vrot.lane.b32.xlu0 %v730, 24
      %v770 = vpop.permute.xlu0 %769
      %771 = vrot.lane.b32.xlu0 %v731, 24
      %v772 = vpop.permute.xlu0 %771
      %773 = vrot.lane.b32.xlu0 %v732, 24
      %v774 = vpop.permute.xlu0 %773
      %775 = vrot.lane.b32.xlu0 %v733, 24
      %v776 = vpop.permute.xlu0 %775
      %777 = vrot.lane.b32.xlu0 %v734, 24
      %v778 = vpop.permute.xlu0 %777
      %779 = vrot.lane.b32.xlu0 %v735, 24
      %v780 = vpop.permute.xlu0 %779
      %781 = vrot.lane.b32.xlu0 %v736, 24
      %v782 = vpop.permute.xlu0 %781
      %783 = vrot.lane.b32.xlu0 %v737, 24
      %v784 = vpop.permute.xlu0 %783
      %785 = vrot.lane.b32.xlu0 %v738, 24
      %v786 = vpop.permute.xlu0 %785
      %vm803 = vcmask 228544
      %804 = vst.msk [vmem:[#allocation2] sm:$0xff] %vm803, %v756
      %805 = vst.msk [vmem:[#allocation2 + $0x8] sm:$0xff] %vm803, %v758
      %806 = vst.msk [vmem:[#allocation2 + $0x10] sm:$0xff] %vm803, %v760
      %807 = vst.msk [vmem:[#allocation2 + $0x18] sm:$0xff] %vm803, %v762
      %808 = vst.msk [vmem:[#allocation2 + $0x20] sm:$0xff] %vm803, %v764
      %809 = vst.msk [vmem:[#allocation2 + $0x28] sm:$0xff] %vm803, %v766
      %810 = vst.msk [vmem:[#allocation2 + $0x30] sm:$0xff] %vm803, %v768
      %811 = vst.msk [vmem:[#allocation2 + $0x38] sm:$0xff] %vm803, %v770
      %812 = vst.msk [vmem:[#allocation2 + $0x40] sm:$0xff] %vm803, %v772
      %813 = vst.msk [vmem:[#allocation2 + $0x48] sm:$0xff] %vm803, %v774
      %814 = vst.msk [vmem:[#allocation2 + $0x50] sm:$0xff] %vm803, %v776
      %815 = vst.msk [vmem:[#allocation2 + $0x58] sm:$0xff] %vm803, %v778
      %816 = vst.msk [vmem:[#allocation2 + $0x60] sm:$0xff] %vm803, %v780
      %817 = vst.msk [vmem:[#allocation2 + $0x68] sm:$0xff] %vm803, %v782
      %818 = vst.msk [vmem:[#allocation2 + $0x70] sm:$0xff] %vm803, %v784
      %819 = vst.msk [vmem:[#allocation2 + $0x78] sm:$0xff] %vm803, %v786
      %v820 = vld [vmem:[%s722 + $0x1] sm:$0xff]
      %v821 = vld [vmem:[%s722 + $0x9] sm:$0xff]
      %v822 = vld [vmem:[%s722 + $0x19] sm:$0xff]
      %v823 = vld [vmem:[%s722 + $0x21] sm:$0xff]
      %v824 = vld [vmem:[%s722 + $0x31] sm:$0xff]
      %v825 = vld [vmem:[%s722 + $0x39] sm:$0xff]
      %v826 = vld [vmem:[%s722 + $0x49] sm:$0xff]
      %v827 = vld [vmem:[%s722 + $0x51] sm:$0xff]
      %v828 = vld [vmem:[%s722 + $0x61] sm:$0xff]
      %v829 = vld [vmem:[%s722 + $0x69] sm:$0xff]
      %v830 = vld [vmem:[%s722 + $0x79] sm:$0xff]
      %v831 = vld [vmem:[%s722 + $0x81] sm:$0xff]
      %v832 = vld [vmem:[%s722 + $0x91] sm:$0xff]
      %v833 = vld [vmem:[%s722 + $0x99] sm:$0xff]
      %v834 = vld [vmem:[%s722 + $0xa9] sm:$0xff]
      %v835 = vld [vmem:[%s722 + $0xb1] sm:$0xff]
      %852 = vrot.lane.b32.xlu0 %v820, 28
      %v853 = vpop.permute.xlu0 %852
      %854 = vrot.lane.b32.xlu0 %v821, 28
      %v855 = vpop.permute.xlu0 %854
      %856 = vrot.lane.b32.xlu0 %v822, 28
      %v857 = vpop.permute.xlu0 %856
      %858 = vrot.lane.b32.xlu0 %v823, 28
      %v859 = vpop.permute.xlu0 %858
      %860 = vrot.lane.b32.xlu0 %v824, 28
      %v861 = vpop.permute.xlu0 %860
      %862 = vrot.lane.b32.xlu0 %v825, 28
      %v863 = vpop.permute.xlu0 %862
      %864 = vrot.lane.b32.xlu0 %v826, 28
      %v865 = vpop.permute.xlu0 %864
      %866 = vrot.lane.b32.xlu0 %v827, 28
      %v867 = vpop.permute.xlu0 %866
      %868 = vrot.lane.b32.xlu0 %v828, 28
      %v869 = vpop.permute.xlu0 %868
      %870 = vrot.lane.b32.xlu0 %v829, 28
      %v871 = vpop.permute.xlu0 %870
      %872 = vrot.lane.b32.xlu0 %v830, 28
      %v873 = vpop.permute.xlu0 %872
      %874 = vrot.lane.b32.xlu0 %v831, 28
      %v875 = vpop.permute.xlu0 %874
      %876 = vrot.lane.b32.xlu0 %v832, 28
      %v877 = vpop.permute.xlu0 %876
      %878 = vrot.lane.b32.xlu0 %v833, 28
      %v879 = vpop.permute.xlu0 %878
      %880 = vrot.lane.b32.xlu0 %v834, 28
      %v881 = vpop.permute.xlu0 %880
      %882 = vrot.lane.b32.xlu0 %v835, 28
      %v883 = vpop.permute.xlu0 %882
      %vm900 = vcmask 261344
      %901 = vst.msk [vmem:[#allocation2] sm:$0xff] %vm900, %v853
      %902 = vst.msk [vmem:[#allocation2 + $0x8] sm:$0xff] %vm900, %v855
      %903 = vst.msk [vmem:[#allocation2 + $0x10] sm:$0xff] %vm900, %v857
      %904 = vst.msk [vmem:[#allocation2 + $0x18] sm:$0xff] %vm900, %v859
      %905 = vst.msk [vmem:[#allocation2 + $0x20] sm:$0xff] %vm900, %v861
      %906 = vst.msk [vmem:[#allocation2 + $0x28] sm:$0xff] %vm900, %v863
      %907 = vst.msk [vmem:[#allocation2 + $0x30] sm:$0xff] %vm900, %v865
      %908 = vst.msk [vmem:[#allocation2 + $0x38] sm:$0xff] %vm900, %v867
      %909 = vst.msk [vmem:[#allocation2 + $0x40] sm:$0xff] %vm900, %v869
      %910 = vst.msk [vmem:[#allocation2 + $0x48] sm:$0xff] %vm900, %v871
      %911 = vst.msk [vmem:[#allocation2 + $0x50] sm:$0xff] %vm900, %v873
      %912 = vst.msk [vmem:[#allocation2 + $0x58] sm:$0xff] %vm900, %v875
      %913 = vst.msk [vmem:[#allocation2 + $0x60] sm:$0xff] %vm900, %v877
      %914 = vst.msk [vmem:[#allocation2 + $0x68] sm:$0xff] %vm900, %v879
      %915 = vst.msk [vmem:[#allocation2 + $0x70] sm:$0xff] %vm900, %v881
      %916 = vst.msk [vmem:[#allocation2 + $0x78] sm:$0xff] %vm900, %v883
      %v917 = vld [vmem:[%s722 + $0x2] sm:$0xff]
      %v918 = vld [vmem:[%s722 + $0xa] sm:$0xff]
      %v919 = vld [vmem:[%s722 + $0x1a] sm:$0xff]
      %v920 = vld [vmem:[%s722 + $0x22] sm:$0xff]
      %v921 = vld [vmem:[%s722 + $0x32] sm:$0xff]
      %v922 = vld [vmem:[%s722 + $0x3a] sm:$0xff]
      %v923 = vld [vmem:[%s722 + $0x4a] sm:$0xff]
      %v924 = vld [vmem:[%s722 + $0x52] sm:$0xff]
      %v925 = vld [vmem:[%s722 + $0x62] sm:$0xff]
      %v926 = vld [vmem:[%s722 + $0x6a] sm:$0xff]
      %v927 = vld [vmem:[%s722 + $0x7a] sm:$0xff]
      %v928 = vld [vmem:[%s722 + $0x82] sm:$0xff]
      %v929 = vld [vmem:[%s722 + $0x92] sm:$0xff]
      %v930 = vld [vmem:[%s722 + $0x9a] sm:$0xff]
      %v931 = vld [vmem:[%s722 + $0xaa] sm:$0xff]
      %v932 = vld [vmem:[%s722 + $0xb2] sm:$0xff]
      %949 = vrot.lane.b32.xlu0 %v917, 32
      %v950 = vpop.permute.xlu0 %949
      %951 = vrot.lane.b32.xlu0 %v918, 32
      %v952 = vpop.permute.xlu0 %951
      %953 = vrot.lane.b32.xlu0 %v919, 32
      %v954 = vpop.permute.xlu0 %953
      %955 = vrot.lane.b32.xlu0 %v920, 32
      %v956 = vpop.permute.xlu0 %955
      %957 = vrot.lane.b32.xlu0 %v921, 32
      %v958 = vpop.permute.xlu0 %957
      %959 = vrot.lane.b32.xlu0 %v922, 32
      %v960 = vpop.permute.xlu0 %959
      %961 = vrot.lane.b32.xlu0 %v923, 32
      %v962 = vpop.permute.xlu0 %961
      %963 = vrot.lane.b32.xlu0 %v924, 32
      %v964 = vpop.permute.xlu0 %963
      %965 = vrot.lane.b32.xlu0 %v925, 32
      %v966 = vpop.permute.xlu0 %965
      %967 = vrot.lane.b32.xlu0 %v926, 32
      %v968 = vpop.permute.xlu0 %967
      %969 = vrot.lane.b32.xlu0 %v927, 32
      %v970 = vpop.permute.xlu0 %969
      %971 = vrot.lane.b32.xlu0 %v928, 32
      %v972 = vpop.permute.xlu0 %971
      %973 = vrot.lane.b32.xlu0 %v929, 32
      %v974 = vpop.permute.xlu0 %973
      %975 = vrot.lane.b32.xlu0 %v930, 32
      %v976 = vpop.permute.xlu0 %975
      %977 = vrot.lane.b32.xlu0 %v931, 32
      %v978 = vpop.permute.xlu0 %977
      %979 = vrot.lane.b32.xlu0 %v932, 32
      %v980 = vpop.permute.xlu0 %979
      %vm997 = vcmask 294144
      %998 = vst.msk [vmem:[#allocation2] sm:$0xff] %vm997, %v950
      %999 = vst.msk [vmem:[#allocation2 + $0x8] sm:$0xff] %vm997, %v952
      %1000 = vst.msk [vmem:[#allocation2 + $0x10] sm:$0xff] %vm997, %v954
      %1001 = vst.msk [vmem:[#allocation2 + $0x18] sm:$0xff] %vm997, %v956
      %1002 = vst.msk [vmem:[#allocation2 + $0x20] sm:$0xff] %vm997, %v958
      %1003 = vst.msk [vmem:[#allocation2 + $0x28] sm:$0xff] %vm997, %v960
      %1004 = vst.msk [vmem:[#allocation2 + $0x30] sm:$0xff] %vm997, %v962
      %1005 = vst.msk [vmem:[#allocation2 + $0x38] sm:$0xff] %vm997, %v964
      %1006 = vst.msk [vmem:[#allocation2 + $0x40] sm:$0xff] %vm997, %v966
      %1007 = vst.msk [vmem:[#allocation2 + $0x48] sm:$0xff] %vm997, %v968
      %1008 = vst.msk [vmem:[#allocation2 + $0x50] sm:$0xff] %vm997, %v970
      %1009 = vst.msk [vmem:[#allocation2 + $0x58] sm:$0xff] %vm997, %v972
      %1010 = vst.msk [vmem:[#allocation2 + $0x60] sm:$0xff] %vm997, %v974
      %1011 = vst.msk [vmem:[#allocation2 + $0x68] sm:$0xff] %vm997, %v976
      %1012 = vst.msk [vmem:[#allocation2 + $0x70] sm:$0xff] %vm997, %v978
      %1013 = vst.msk [vmem:[#allocation2 + $0x78] sm:$0xff] %vm997, %v980
      %v1014 = vld [vmem:[#allocation2] sm:$0xff]
      %v1015 = vld [vmem:[#allocation2 + $0x8] sm:$0xff]
      %v1016 = vld [vmem:[#allocation2 + $0x10] sm:$0xff]
      %v1017 = vld [vmem:[#allocation2 + $0x18] sm:$0xff]
      %v1018 = vld [vmem:[#allocation2 + $0x20] sm:$0xff]
      %v1019 = vld [vmem:[#allocation2 + $0x28] sm:$0xff]
      %v1020 = vld [vmem:[#allocation2 + $0x30] sm:$0xff]
      %v1021 = vld [vmem:[#allocation2 + $0x38] sm:$0xff]
      %v1022 = vld [vmem:[#allocation2 + $0x40] sm:$0xff]
      %v1023 = vld [vmem:[#allocation2 + $0x48] sm:$0xff]
      %v1024 = vld [vmem:[#allocation2 + $0x50] sm:$0xff]
      %v1025 = vld [vmem:[#allocation2 + $0x58] sm:$0xff]
      %v1026 = vld [vmem:[#allocation2 + $0x60] sm:$0xff]
      %v1027 = vld [vmem:[#allocation2 + $0x68] sm:$0xff]
      %v1028 = vld [vmem:[#allocation2 + $0x70] sm:$0xff]
      %v1029 = vld [vmem:[#allocation2 + $0x78] sm:$0xff]
      %v1030 = vld [vmem:[%s1] sm:$0xff]
      %v1031 = vld [vmem:[%s1 + $0x8] sm:$0xff]
      %v1032 = vld [vmem:[%s1 + $0x10] sm:$0xff]
      %v1033 = vld [vmem:[%s1 + $0x18] sm:$0xff]
      %v1034 = vld [vmem:[%s1 + $0x20] sm:$0xf]
      %v1035 = vld [vmem:[%s2] sm:$0x1]
      %v1037 = vlaneseq
      %v1038 = vshrl.u32 %v1037, 7
      %v1039 = vsub.s32 0, %v1038
      %v1040 = vrot.slane %v1035, %v1039
      %vm1042 = vcmask 293888
      %v1044 = vsel %vm1042, %v1014, 0
      %v1047 = vsel %vm1042, %v1015, 0
      %v1050 = vsel %vm1042, %v1016, 0
      %v1053 = vsel %vm1042, %v1017, 0
      %v1056 = vsel %vm1042, %v1018, 0
      %v1059 = vsel %vm1042, %v1019, 0
      %v1062 = vsel %vm1042, %v1020, 0
      %v1065 = vsel %vm1042, %v1021, 0
      %v1068 = vsel %vm1042, %v1022, 0
      %v1071 = vsel %vm1042, %v1023, 0
      %v1074 = vsel %vm1042, %v1024, 0
      %v1077 = vsel %vm1042, %v1025, 0
      %v1080 = vsel %vm1042, %v1026, 0
      %v1083 = vsel %vm1042, %v1027, 0
      %v1086 = vsel %vm1042, %v1028, 0
      %v1089 = vsel %vm1042, %v1029, 0
      %vm1091 = vcmask 1043456
      %v1093 = vsel %vm1091, %v1034, 0
      %1095 = vmatprep.subr.mxu0 0.0
      %1096 = vmatpush1.msra.mxu0 %v1030
      %1097 = vmatprep.subr.mxu0 0.0
      %1098 = vmatpush1.msra.mxu0 %v1031
      %1099 = vmatprep.subr.mxu0 0.0
      %1100 = vmatpush1.msra.mxu0 %v1032
      %1101 = vmatprep.subr.mxu0 0.0
      %1102 = vmatpush1.msra.mxu0 %v1033
      %1103 = vmatprep.subr.mxu0 0.0
      %1104 = vmatpush1.msra.mxu0 %v1093
      %1105 = vmatprep.subr.mxu0 0.0
      %1106 = vmatpush1.msra.mxu0 0.0
      %1107 = vmatprep.subr.mxu0 0.0
      %1108 = vmatpush1.msra.mxu0 0.0
      %1109 = vmatprep.subr.mxu0 0.0
      %1110 = vmatpush1.msra.mxu0 0.0
      %1111 = vmatprep.subr.mxu0 0.0
      %1112 = vmatpush1.msra.mxu0 0.0
      %1113 = vmatprep.subr.mxu0 0.0
      %1114 = vmatpush1.msra.mxu0 0.0
      %1115 = vmatprep.subr.mxu0 0.0
      %1116 = vmatpush1.msra.mxu0 0.0
      %1117 = vmatprep.subr.mxu0 0.0
      %1118 = vmatpush1.msra.mxu0 0.0
      %1119 = vmatprep.subr.mxu0 0.0
      %1120 = vmatpush1.msra.mxu0 0.0
      %1121 = vmatprep.subr.mxu0 0.0
      %1122 = vmatpush1.msra.mxu0 0.0
      %1123 = vmatprep.subr.mxu0 0.0
      %1124 = vmatpush1.msra.mxu0 0.0
      %1125 = vmatprep.subr.mxu0 0.0
      %1126 = vmatpush1.msra.mxu0 0.0
      %1127 = vmatprep.subr.mxu0 0.0
      %1128 = vmatpush1.msra.mxu0 0.0
      %1129 = vmatprep.subr.mxu0 0.0
      %1130 = vmatpush1.msra.mxu0 0.0
      %1131 = vmatprep.subr.mxu0 0.0
      %1132 = vmatpush1.msra.mxu0 0.0
      %1133 = vmatprep.subr.mxu0 0.0
      %1134 = vmatpush1.msra.mxu0 0.0
      %1135 = vmatprep.subr.mxu0 0.0
      %1136 = vmatpush1.msra.mxu0 0.0
      %1137 = vmatprep.subr.mxu0 0.0
      %1138 = vmatpush1.msra.mxu0 0.0
      %1139 = vmatprep.subr.mxu0 0.0
      %1140 = vmatpush1.msra.mxu0 0.0
      %1141 = vmatprep.subr.mxu0 0.0
      %1142 = vmatpush1.msra.mxu0 0.0
      %1143 = vmatprep.subr.mxu0 0.0
      %1144 = vmatpush1.msra.mxu0 0.0
      %1145 = vmatprep.subr.mxu0 0.0
      %1146 = vmatpush1.msra.mxu0 0.0
      %1147 = vmatprep.subr.mxu0 0.0
      %1148 = vmatpush1.msra.mxu0 0.0
      %1149 = vmatprep.subr.mxu0 0.0
      %1150 = vmatpush1.msra.mxu0 0.0
      %1151 = vmatprep.subr.mxu0 0.0
      %1152 = vmatpush1.msra.mxu0 0.0
      %1153 = vmatprep.subr.mxu0 0.0
      %1154 = vmatpush1.msra.mxu0 0.0
      %1155 = vmatprep.subr.mxu0 0.0
      %1156 = vmatpush1.msra.mxu0 0.0
      %1157 = vmatprep.subr.mxu0 0.0
      %1158 = vmatpush1.msra.mxu0 0.0
      %1159 = vmatprep.mubr.f32.mxu0 0.0
      %1160 = vmatmul.mubr.f32.gmra.mrb[0].mxu0 %v1044
      %v1161 = vpop.f32.mrb[0].mxu0
      %v1162 = vadd.f32 %v1040, %v1161
      %v1163 = vpop.f32.mrb[0].mxu0
      %1164 = vmatprep.mubr.f32.mxu0 0.0
      %1165 = vmatmul.mubr.f32.gmra.mrb[0].mxu0 %v1047
      %v1166 = vpop.f32.mrb[0].mxu0
      %v1167 = vadd.f32 %v1040, %v1166
      %v1168 = vpop.f32.mrb[0].mxu0
      %1169 = vmatprep.mubr.f32.mxu0 0.0
      %1170 = vmatmul.mubr.f32.gmra.mrb[0].mxu0 %v1050
      %v1171 = vpop.f32.mrb[0].mxu0
      %v1172 = vadd.f32 %v1040, %v1171
      %v1173 = vpop.f32.mrb[0].mxu0
      %1174 = vmatprep.mubr.f32.mxu0 0.0
      %1175 = vmatmul.mubr.f32.gmra.mrb[0].mxu0 %v1053
      %v1176 = vpop.f32.mrb[0].mxu0
      %v1177 = vadd.f32 %v1040, %v1176
      %v1178 = vpop.f32.mrb[0].mxu0
      %1179 = vmatprep.mubr.f32.mxu0 0.0
      %1180 = vmatmul.mubr.f32.gmra.mrb[0].mxu0 %v1056
      %v1181 = vpop.f32.mrb[0].mxu0
      %v1182 = vadd.f32 %v1040, %v1181
      %v1183 = vpop.f32.mrb[0].mxu0
      %1184 = vmatprep.mubr.f32.mxu0 0.0
      %1185 = vmatmul.mubr.f32.gmra.mrb[0].mxu0 %v1059
      %v1186 = vpop.f32.mrb[0].mxu0
      %v1187 = vadd.f32 %v1040, %v1186
      %v1188 = vpop.f32.mrb[0].mxu0
      %1189 = vmatprep.mubr.f32.mxu0 0.0
      %1190 = vmatmul.mubr.f32.gmra.mrb[0].mxu0 %v1062
      %v1191 = vpop.f32.mrb[0].mxu0
      %v1192 = vadd.f32 %v1040, %v1191
      %v1193 = vpop.f32.mrb[0].mxu0
      %1194 = vmatprep.mubr.f32.mxu0 0.0
      %1195 = vmatmul.mubr.f32.gmra.mrb[0].mxu0 %v1065
      %v1196 = vpop.f32.mrb[0].mxu0
      %v1197 = vadd.f32 %v1040, %v1196
      %v1198 = vpop.f32.mrb[0].mxu0
      %1199 = vmatprep.mubr.f32.mxu0 0.0
      %1200 = vmatmul.mubr.f32.gmra.mrb[0].mxu0 %v1068
      %v1201 = vpop.f32.mrb[0].mxu0
      %v1202 = vadd.f32 %v1040, %v1201
      %v1203 = vpop.f32.mrb[0].mxu0
      %1204 = vmatprep.mubr.f32.mxu0 0.0
      %1205 = vmatmul.mubr.f32.gmra.mrb[0].mxu0 %v1071
      %v1206 = vpop.f32.mrb[0].mxu0
      %v1207 = vadd.f32 %v1040, %v1206
      %v1208 = vpop.f32.mrb[0].mxu0
      %1209 = vmatprep.mubr.f32.mxu0 0.0
      %1210 = vmatmul.mubr.f32.gmra.mrb[0].mxu0 %v1074
      %v1211 = vpop.f32.mrb[0].mxu0
      %v1212 = vadd.f32 %v1040, %v1211
      %v1213 = vpop.f32.mrb[0].mxu0
      %1214 = vmatprep.mubr.f32.mxu0 0.0
      %1215 = vmatmul.mubr.f32.gmra.mrb[0].mxu0 %v1077
      %v1216 = vpop.f32.mrb[0].mxu0
      %v1217 = vadd.f32 %v1040, %v1216
      %v1218 = vpop.f32.mrb[0].mxu0
      %1219 = vmatprep.mubr.f32.mxu0 0.0
      %1220 = vmatmul.mubr.f32.gmra.mrb[0].mxu0 %v1080
      %v1221 = vpop.f32.mrb[0].mxu0
      %v1222 = vadd.f32 %v1040, %v1221
      %v1223 = vpop.f32.mrb[0].mxu0
      %1224 = vmatprep.mubr.f32.mxu0 0.0
      %1225 = vmatmul.mubr.f32.gmra.mrb[0].mxu0 %v1083
      %v1226 = vpop.f32.mrb[0].mxu0
      %v1227 = vadd.f32 %v1040, %v1226
      %v1228 = vpop.f32.mrb[0].mxu0
      %1229 = vmatprep.mubr.f32.mxu0 0.0
      %1230 = vmatmul.mubr.f32.gmra.mrb[0].mxu0 %v1086
      %v1231 = vpop.f32.mrb[0].mxu0
      %v1232 = vadd.f32 %v1040, %v1231
      %v1233 = vpop.f32.mrb[0].mxu0
      %1234 = vmatprep.mubr.f32.mxu0 0.0
      %1235 = vmatmul.mubr.f32.gmra.mrb[0].mxu0 %v1089
      %v1236 = vpop.f32.mrb[0].mxu0
      %v1237 = vadd.f32 %v1040, %v1236
      %v1238 = vpop.f32.mrb[0].mxu0
      %1239 = vdwg.mxu0
      %vm1240 = vcmask 130048
      %1241 = vst.msk [vmem:[%s194] sm:$0xff] %vm1240, %v1162
      %1242 = vst.msk [vmem:[%s194 + $0x8] sm:$0xff] %vm1240, %v1167
      %1243 = vst.msk [vmem:[%s194 + $0x10] sm:$0xff] %vm1240, %v1172
      %1244 = vst.msk [vmem:[%s194 + $0x18] sm:$0xff] %vm1240, %v1177
      %1245 = vst.msk [vmem:[%s194 + $0x20] sm:$0xff] %vm1240, %v1182
      %1246 = vst.msk [vmem:[%s194 + $0x28] sm:$0xff] %vm1240, %v1187
      %1247 = vst.msk [vmem:[%s194 + $0x30] sm:$0xff] %vm1240, %v1192
      %1248 = vst.msk [vmem:[%s194 + $0x38] sm:$0xff] %vm1240, %v1197
      %1249 = vst.msk [vmem:[%s194 + $0x40] sm:$0xff] %vm1240, %v1202
      %1250 = vst.msk [vmem:[%s194 + $0x48] sm:$0xff] %vm1240, %v1207
      %1251 = vst.msk [vmem:[%s194 + $0x50] sm:$0xff] %vm1240, %v1212
      %1252 = vst.msk [vmem:[%s194 + $0x58] sm:$0xff] %vm1240, %v1217
      %1253 = vst.msk [vmem:[%s194 + $0x60] sm:$0xff] %vm1240, %v1222
      %1254 = vst.msk [vmem:[%s194 + $0x68] sm:$0xff] %vm1240, %v1227
      %1255 = vst.msk [vmem:[%s194 + $0x70] sm:$0xff] %vm1240, %v1232
      %1256 = vst.msk [vmem:[%s194 + $0x78] sm:$0xff] %vm1240, %v1237
      %s1257 = smul.u32 8, %s19
      %p1258 = scmp.lt.s32.totalorder %s18, 1
      %s1259 = scalar_select %p1258, %s18, 1
      %p1260 = scmp.lt.s32.totalorder %s1257, 15
      %s1261 = scalar_select %p1260, %s1257, 15
      %s1262 = smul.addr %s1261, 2
      %s1263 = smul.addr %s1259, 32
      %s1264 = sadd.s32 %s1262, %s1263
      %s1265 = smul.addr %s1264, 8
      %s1266 = scalar_lea.vmem %s3, %s1265
      // Predicated region
      $region33: #{upsample_forward.1} parent=31 // pred_check
        %p1267 = pneg %p114
      $region34: #{upsample_forward.1} parent=31 // pred_check_branch
        %1269 = sbr.rel (%p1267) target = $region36
      $region35: #{upsample_forward.1} parent=31 // pred_region
        %s1270 = smul.u32 8, %s19
      $region36: #{upsample_forward.1} parent=31 // pred_fallthru
        _
    $region32: #{upsample_forward.1} parent=5 // pred_fallthru
      _
    %p1271 = scmp.le.s32.totalorder 2, %s9
    // Predicated region
    $region37: #{upsample_forward.1} parent=5 // pred_check
      %p1272 = pneg %p1271
    $region38: #{upsample_forward.1} parent=5 // pred_check_branch
      %1274 = sbr.rel (%p1272) target = $region40
    $region39: #{upsample_forward.1} parent=5 // pred_region
      %s1275 = ssub.s32 %s9, 2
      // Predicated region
      $region41: #{upsample_forward.1} parent=39 // pred_check
        %p1276 = pneg %p120
      $region42: #{upsample_forward.1} parent=39 // pred_check_branch
        %1278 = sbr.rel (%p1276) target = $region44
      $region43: #{upsample_forward.1} parent=39 // pred_region
        %s1279 = smul.u32 8, %s21
        %p1280 = scmp.lt.s32.totalorder %s20, 1
        %s1281 = scalar_select %p1280, %s20, 1
        %p1282 = scmp.lt.s32.totalorder %s1279, 15
        %s1283 = scalar_select %p1282, %s1279, 15
        %s1284 = smul.addr %s1283, 2
        %s1285 = smul.addr %s1281, 32
        %s1286 = sadd.s32 %s1284, %s1285
        %s1287 = smul.addr %s1286, 8
        %s1288 = scalar_lea.vmem %s3, %s1287
      $region44: #{upsample_forward.1} parent=39 // pred_fallthru
        _
    $region40: #{upsample_forward.1} parent=5 // pred_fallthru
      _
  $region6: #{upsample_forward.1} parent=0 // loop_footer
    %s13 = sadd.s32 1, %s9
  $region7: #{upsample_forward.1} parent=0 // loop_footer_branch
    %8 = sbr.rel target = $region3
  $region8: #{upsample_forward.1} parent=0 // loop_exit
    _

</llo_original>
